<compile_context>
chip_gen: v7x
topology: tpu7x:2x2x1
jax: 0.10.0
libtpu: 0.0.40
codegen_flags: <defaults>
</compile_context>

<pallas_src>
import functools

import jax
import jax.numpy as jnp
from jax import lax
from jax.experimental import pallas as pl
from jax.experimental.pallas import tpu as pltpu


def _round_up(x: int, m: int) -> int:
    return ((x + m - 1) // m) * m


def _value_net_kernel(x_ref, w1_ref, b1_ref, w2_ref, b2_ref, w3_ref, b3_ref,
                      o_ref, *, mb, num_chunks, rem):
    """Fused MLP for one (TB, D) batch tile, processed in MB-row chunks.

    MXU: two bf16 matmuls with f32 accumulation per chunk.
    VPU: f32 bias add + ReLU, and the width-1 value head as multiply + lane reduce
    (keeps the MXU free of a 1-useful-lane matmul).
    """
    b1 = b1_ref[...]          # (1, H1p) f32
    b2 = b2_ref[...]          # (1, H2p) f32
    w3 = w3_ref[...]          # (1, H2p) f32 row; padded lanes are zero
    b3 = b3_ref[0, 0]         # scalar f32 from SMEM

    def chunk(r0, rows):
        x = x_ref[pl.ds(r0, rows), :]                                  # (rows, D) bf16
        h1 = jnp.dot(x, w1_ref[...],
                     preferred_element_type=jnp.float32) + b1          # f32
        h1 = jnp.maximum(h1, 0.0)                                      # ReLU (dropout = identity)
        h2 = jnp.dot(h1.astype(jnp.bfloat16), w2_ref[...],
                     preferred_element_type=jnp.float32) + b2          # f32
        h2 = jnp.maximum(h2, 0.0)                                      # ReLU (dropout = identity)
        out = jnp.sum(h2 * w3, axis=-1, keepdims=True) + b3            # (rows, 1)
        o_ref[pl.ds(r0, rows), :] = out.astype(o_ref.dtype)

    if num_chunks == 1:
        chunk(0, mb)
    elif num_chunks > 1:
        def body(i, carry):
            chunk(pl.multiple_of(i * mb, mb), mb)
            return carry
        lax.fori_loop(0, num_chunks, body, 0)
    if rem > 0:
        chunk(num_chunks * mb, rem)            # static ragged tail (multiple of 16 rows)


def value_network_pallas(state, params, *, block_batch=4096, chunk_rows=512):
    """state: (B, state_dim). params from init_value_network_params. Returns (B, 1) f32."""
    w1, b1 = params["w1"], params["b1"]        # bf16 / f32
    w2, b2 = params["w2"], params["b2"]        # bf16 / f32
    w3, b3 = params["w3"], params["b3"]        # f32 (1, H2p) row / (1, 1) scalar

    B, D = state.shape
    H1 = w1.shape[1]
    H2 = w2.shape[1]

    # Batch-tile sizing:
    #   * >= 2 grid steps and an even count -> both v7x TensorCores get balanced work;
    #   * tile derived from the step count (not B rounded up to a fixed tile), capping
    #     zero-row padding waste at < 16 rows per step;
    #   * 16-row alignment keeps bf16 sublane tiling happy.
    ALIGN = 16
    grid_steps = max(2, pl.cdiv(B, block_batch))
    if grid_steps % 2:
        grid_steps += 1
    TB = _round_up(pl.cdiv(B, grid_steps), ALIGN)
    Bp = TB * grid_steps

    # Inner row-chunking (keeps h1/h2 intermediates vreg/VMEM-slot friendly).
    mb = min(_round_up(chunk_rows, ALIGN), TB)
    num_chunks, rem = TB // mb, TB % mb

    x = state.astype(jnp.bfloat16)             # halves the dominant per-step HBM stream
    if Bp != B:
        # Padded rows are all-zero -> flow through harmlessly and are sliced off below.
        x = jnp.pad(x, ((0, Bp - B), (0, 0)))

    flops = 2 * Bp * (D * H1 + H1 * H2 + H2)
    bytes_accessed = (2 * Bp * D                      # x (bf16)
                      + 2 * (D * H1 + H1 * H2)        # w1, w2 (bf16)
                      + 4 * (H1 + 2 * H2 + 1)         # b1, b2, w3, b3 (f32)
                      + 4 * Bp)                       # out (f32)

    kernel = functools.partial(_value_net_kernel, mb=mb, num_chunks=num_chunks, rem=rem)

    out = pl.pallas_call(
        kernel,
        out_shape=jax.ShapeDtypeStruct((Bp, 1), jnp.float32),
        grid=(grid_steps,),
        in_specs=[
            # x: tiled along batch, pipelined HBM<->VMEM.
            pl.BlockSpec((TB, D), lambda i: (i, 0)),
            # Weights / biases: constant block index -> VMEM-resident across steps.
            pl.BlockSpec((D, H1), lambda i: (0, 0)),
            pl.BlockSpec((1, H1), lambda i: (0, 0)),
            pl.BlockSpec((H1, H2), lambda i: (0, 0)),
            pl.BlockSpec((1, H2), lambda i: (0, 0)),
            pl.BlockSpec((1, H2), lambda i: (0, 0)),
            # b3 is a single scalar: SMEM, not a degenerate VMEM tile.
            pl.BlockSpec((1, 1), lambda i: (0, 0),
                         memory_space=pltpu.MemorySpace.SMEM),
        ],
        out_specs=pl.BlockSpec((TB, 1), lambda i: (i, 0)),
        compiler_params=pltpu.CompilerParams(
            dimension_semantics=("parallel",),        # megacore sharding on v7x
            vmem_limit_bytes=32 * 1024 * 1024,        # ample on v5e/v6e/v7x for this footprint
        ),
        cost_estimate=pl.CostEstimate(
            flops=flops, transcendentals=0, bytes_accessed=bytes_accessed),
    )(x, w1, b1, w2, b2, w3, b3)

    return out[:B]


def init_value_network_params(key, state_dim, hidden_dims=(128, 64), lane=128):
    """Xavier-normal weights, zero biases (matches ValueNetwork._init_weights).

    Hidden widths are zero-padded to the 128-lane boundary (lane-dense matmuls);
    padded columns / rows / bias entries are zero, so the forward pass equals the
    unpadded network.  w1/w2 are stored bf16 (MXU operands); biases, the head row
    w3, and b3 stay f32.
    """
    h1, h2 = hidden_dims
    h1p = _round_up(h1, lane)
    h2p = _round_up(h2, lane)

    k1, k2, k3 = jax.random.split(key, 3)

    def xavier(k, fan_in, fan_out):
        std = (2.0 / (fan_in + fan_out)) ** 0.5      # xavier_normal_, gain=1
        return std * jax.random.normal(k, (fan_in, fan_out), jnp.float32)

    w1 = jnp.pad(xavier(k1, state_dim, h1), ((0, 0), (0, h1p - h1))).astype(jnp.bfloat16)
    b1 = jnp.zeros((1, h1p), jnp.float32)

    w2 = jnp.pad(xavier(k2, h1, h2), ((0, h1p - h1), (0, h2p - h2))).astype(jnp.bfloat16)
    b2 = jnp.zeros((1, h2p), jnp.float32)

    w3 = jnp.pad(xavier(k3, h2, 1).T, ((0, 0), (0, h2p - h2)))      # (1, h2p) f32
    b3 = jnp.zeros((1, 1), jnp.float32)

    return {"w1": w1, "b1": b1, "w2": w2, "b2": b2, "w3": w3, "b3": b3}


def value_network_ref(state, params):
    """Pure-JAX reference with the same mixed precision (bf16 dots, f32 accumulate)."""
    x = state.astype(jnp.bfloat16)
    h = jnp.maximum(
        jnp.dot(x, params["w1"], preferred_element_type=jnp.float32) + params["b1"], 0.0)
    h = jnp.maximum(
        jnp.dot(h.astype(jnp.bfloat16), params["w2"],
                preferred_element_type=jnp.float32) + params["b2"], 0.0)
    return jnp.sum(h * params["w3"], axis=-1, keepdims=True) + params["b3"][0, 0]


if __name__ == "__main__":
    key = jax.random.PRNGKey(0)
    k_param, k_state = jax.random.split(key)

    batch, state_dim = 8, 32
    params = init_value_network_params(k_param, state_dim, hidden_dims=(128, 64))
    state = jax.random.normal(k_state, (batch, state_dim), jnp.float32)

    out = value_network_pallas(state, params)
    out = jax.block_until_ready(out)

    ref = value_network_ref(state, params)
    assert out.shape == (batch, 1), out.shape
    assert jnp.allclose(out, ref, atol=2e-2, rtol=2e-2), (out, ref)

    print("KERNEL_OK")
</pallas_src>

<mosaic_0001>
module attributes {stable_mosaic.version = 11 : i64} {
  func.func @_value_net_kernel(%arg0: i32, %arg1: memref<16x32xbf16, #tpu.memory_space<vmem>>, %arg2: memref<32x128xbf16, #tpu.memory_space<vmem>>, %arg3: memref<1x128xf32, #tpu.memory_space<vmem>>, %arg4: memref<128x128xbf16, #tpu.memory_space<vmem>>, %arg5: memref<1x128xf32, #tpu.memory_space<vmem>>, %arg6: memref<1x128xf32, #tpu.memory_space<vmem>>, %arg7: memref<1x1xf32, #tpu.memory_space<smem>>, %arg8: memref<16x1xf32, #tpu.memory_space<vmem>>) attributes {dimension_semantics = [#tpu.dimension_semantics<parallel>], iteration_bounds = array<i64: 2>, scalar_prefetch = 0 : i64, scratch_operands = 0 : i64, tpu.core_type = #tpu.core_type<tc>, window_params = [{transform_indices = @transform_0, window_bounds = array<i64: 16, 32>}, {pipeline_mode = #tpu.pipeline_mode<synchronous>, transform_indices = @transform_1, window_bounds = array<i64: 32, 128>}, {pipeline_mode = #tpu.pipeline_mode<synchronous>, transform_indices = @transform_2, window_bounds = array<i64: 1, 128>}, {pipeline_mode = #tpu.pipeline_mode<synchronous>, transform_indices = @transform_3, window_bounds = array<i64: 128, 128>}, {pipeline_mode = #tpu.pipeline_mode<synchronous>, transform_indices = @transform_4, window_bounds = array<i64: 1, 128>}, {pipeline_mode = #tpu.pipeline_mode<synchronous>, transform_indices = @transform_5, window_bounds = array<i64: 1, 128>}, {transform_indices = @transform_6, window_bounds = array<i64: 1, 1>}, {transform_indices = @transform_7, window_bounds = array<i64: 16, 1>}]} {
    %c0 = arith.constant 0 : index
    %c0_0 = arith.constant 0 : index
    %0 = vector.load %arg3[%c0, %c0_0] : memref<1x128xf32, #tpu.memory_space<vmem>>, vector<1x128xf32>
    %c0_1 = arith.constant 0 : index
    %c0_2 = arith.constant 0 : index
    %1 = vector.load %arg5[%c0_1, %c0_2] : memref<1x128xf32, #tpu.memory_space<vmem>>, vector<1x128xf32>
    %c0_3 = arith.constant 0 : index
    %c0_4 = arith.constant 0 : index
    %2 = vector.load %arg6[%c0_3, %c0_4] : memref<1x128xf32, #tpu.memory_space<vmem>>, vector<1x128xf32>
    %c0_5 = arith.constant 0 : index
    %c0_6 = arith.constant 0 : index
    %3 = memref.load %arg7[%c0_5, %c0_6] : memref<1x1xf32, #tpu.memory_space<smem>>
    %c0_7 = arith.constant 0 : index
    %c0_8 = arith.constant 0 : index
    %4 = vector.load %arg1[%c0_7, %c0_8] : memref<16x32xbf16, #tpu.memory_space<vmem>>, vector<16x32xbf16>
    %c0_9 = arith.constant 0 : index
    %c0_10 = arith.constant 0 : index
    %5 = vector.load %arg2[%c0_9, %c0_10] : memref<32x128xbf16, #tpu.memory_space<vmem>>, vector<32x128xbf16>
    %cst = arith.constant dense<0.000000e+00> : vector<16x128xf32>
    %6 = tpu.matmul %4, %5, %cst {dimension_numbers = #tpu.dot_dimension_numbers<[1], [0], [0], [1], [0, 0, 1, 1], [], []>} : vector<16x32xbf16>, vector<32x128xbf16>, vector<16x128xf32> -> vector<16x128xf32>
    %7 = vector.broadcast %0 : vector<1x128xf32> to vector<16x128xf32>
    %8 = arith.addf %6, %7 : vector<16x128xf32>
    %cst_11 = arith.constant 0.000000e+00 : f32
    %9 = vector.broadcast %cst_11 : f32 to vector<16x128xf32>
    %10 = arith.maximumf %8, %9 : vector<16x128xf32>
    %11 = arith.truncf %10 : vector<16x128xf32> to vector<16x128xbf16>
    %c0_12 = arith.constant 0 : index
    %c0_13 = arith.constant 0 : index
    %12 = vector.load %arg4[%c0_12, %c0_13] : memref<128x128xbf16, #tpu.memory_space<vmem>>, vector<128x128xbf16>
    %cst_14 = arith.constant dense<0.000000e+00> : vector<16x128xf32>
    %13 = tpu.matmul %11, %12, %cst_14 {dimension_numbers = #tpu.dot_dimension_numbers<[1], [0], [0], [1], [0, 0, 1, 1], [], []>} : vector<16x128xbf16>, vector<128x128xbf16>, vector<16x128xf32> -> vector<16x128xf32>
    %14 = vector.broadcast %1 : vector<1x128xf32> to vector<16x128xf32>
    %15 = arith.addf %13, %14 : vector<16x128xf32>
    %cst_15 = arith.constant 0.000000e+00 : f32
    %16 = vector.broadcast %cst_15 : f32 to vector<16x128xf32>
    %17 = arith.maximumf %15, %16 : vector<16x128xf32>
    %18 = vector.broadcast %2 : vector<1x128xf32> to vector<16x128xf32>
    %19 = arith.mulf %17, %18 : vector<16x128xf32>
    %cst_16 = arith.constant dense<0.000000e+00> : vector<16xf32>
    %20 = vector.multi_reduction <add>, %19, %cst_16 [1] : vector<16x128xf32> to vector<16xf32>
    %21 = vector.shape_cast %20 : vector<16xf32> to vector<16x1xf32>
    %22 = vector.broadcast %3 : f32 to vector<16x1xf32>
    %23 = arith.addf %21, %22 : vector<16x1xf32>
    %c0_17 = arith.constant 0 : index
    %c0_18 = arith.constant 0 : index
    %24 = vector.load %arg8[%c0_17, %c0_18] : memref<16x1xf32, #tpu.memory_space<vmem>>, vector<16x1xf32>
    tpu.vector_store %arg8[%c0_17, %c0_18], %23 {strides = array<i32>} : memref<16x1xf32, #tpu.memory_space<vmem>>, vector<16x1xf32>,
    return
  }
  func.func @transform_0(%arg0: i32) -> (i32, i32) {
    %c0_i32 = arith.constant 0 : i32
    %c0_i32_0 = arith.constant 0 : i32
    return %arg0, %c0_i32 : i32, i32
  }
  func.func @transform_1(%arg0: i32) -> (i32, i32) {
    %c0_i32 = arith.constant 0 : i32
    %c0_i32_0 = arith.constant 0 : i32
    %c0_i32_1 = arith.constant 0 : i32
    return %c0_i32, %c0_i32_0 : i32, i32
  }
  func.func @transform_2(%arg0: i32) -> (i32, i32) {
    %c0_i32 = arith.constant 0 : i32
    %c0_i32_0 = arith.constant 0 : i32
    %c0_i32_1 = arith.constant 0 : i32
    return %c0_i32, %c0_i32_0 : i32, i32
  }
  func.func @transform_3(%arg0: i32) -> (i32, i32) {
    %c0_i32 = arith.constant 0 : i32
    %c0_i32_0 = arith.constant 0 : i32
    %c0_i32_1 = arith.constant 0 : i32
    return %c0_i32, %c0_i32_0 : i32, i32
  }
  func.func @transform_4(%arg0: i32) -> (i32, i32) {
    %c0_i32 = arith.constant 0 : i32
    %c0_i32_0 = arith.constant 0 : i32
    %c0_i32_1 = arith.constant 0 : i32
    return %c0_i32, %c0_i32_0 : i32, i32
  }
  func.func @transform_5(%arg0: i32) -> (i32, i32) {
    %c0_i32 = arith.constant 0 : i32
    %c0_i32_0 = arith.constant 0 : i32
    %c0_i32_1 = arith.constant 0 : i32
    return %c0_i32, %c0_i32_0 : i32, i32
  }
  func.func @transform_6(%arg0: i32) -> (i32, i32) {
    %c0_i32 = arith.constant 0 : i32
    %c0_i32_0 = arith.constant 0 : i32
    %c0_i32_1 = arith.constant 0 : i32
    return %c0_i32, %c0_i32_0 : i32, i32
  }
  func.func @transform_7(%arg0: i32) -> (i32, i32) {
    %c0_i32 = arith.constant 0 : i32
    %c0_i32_0 = arith.constant 0 : i32
    return %arg0, %c0_i32 : i32, i32
  }
}

</mosaic_0001>

<llo_original>
// kernel: tpu_custom_call.1
$region0: #{tpu_custom_call.1}
  #allocation0 [shape = 'u32[]', space=smem, size = 0x4, offset = 0x4, fixed_abs, tag = 'smem constant byte address 0x4 - core index']
  #allocation1 [shape = 'u32[144,128]{1,0:T(1,128)}', space=vmem, size = 0x12000, scoped, tag = 'internal scratch']
  #allocation2 [shape = 'f32[1,1]{1,0:T(1,128)S(6)}', space=smem, size = 0x200, scoped, tag = 'scoped memory for tpu_custom_call.1']
  %s0 = inlined_call_operand.hbm [shape: bf16[32,32], index: 0, kind: input, shape index: {}]
  %s1 = inlined_call_operand.hbm [shape: bf16[32,128], index: 1, kind: input, shape index: {}]
  %s2 = inlined_call_operand.vmem [shape: f32[1,128], index: 2, kind: input, shape index: {}]
  %s3 = inlined_call_operand.hbm [shape: bf16[128,128], index: 3, kind: input, shape index: {}]
  %s4 = inlined_call_operand.vmem [shape: f32[1,128], index: 4, kind: input, shape index: {}]
  %s5 = inlined_call_operand.vmem [shape: f32[1,128], index: 5, kind: input, shape index: {}]
  %s6 = inlined_call_operand.<no memory space> [shape: f32[1,1], index: 6, kind: input, shape index: {}]
  %s7 = inlined_call_operand.vmem [shape: f32[32,1], index: 7, kind: output, shape index: {}]
  %s8 = sld [smem:[#allocation0]]
  $region73: #{tpu_custom_call.1} parent=0
    _
  %s10 = ssub.s32 1, %s8
  %s11 = scalar_select 0, %s10, %s8
  %12 = sst [smem:[#allocation2]] %s6
  $region1: #{tpu_custom_call.1} parent=0
    #allocation3 [shape = 'u8[8192]{0}', space=vmem, size = 0x2000, scoped, tag = 'input window, operand 0']
    #allocation4 [shape = 's32[2]{0}', space=sflag, size = 0x8, scoped, tag = 'scoped memory for tpu_custom_call.1']
    #allocation5 [shape = 'u8[8192]{0}', space=vmem, size = 0x2000, scoped, tag = 'input window, operand 1, single buffered']
    #allocation6 [shape = 's32[1]{0}', space=sflag, size = 0x4, scoped, tag = 'scoped memory for tpu_custom_call.1']
    #allocation7 [shape = 'u8[32768]{0}', space=vmem, size = 0x8000, scoped, tag = 'input window, operand 3, single buffered']
    %13 = vsyncpa [#allocation4], 0
    %s14 = scalar_lea.sflag [#allocation4], 1
    %15 = vsyncpa %s14, 0
    %16 = vsyncpa [#allocation6], 0
    loop: start=0, step=1, limit=4
    $region2: #{tpu_custom_call.1} parent=1 // loop_pre_header
      _
    $region3: #{tpu_custom_call.1} parent=1 // loop_header
      %s18 = sphi 0, %s22
      %p19 = scmp.ge.s32.totalorder %s18, 4
      %s28 = sphi 0, %s30
      %s31 = sphi 0, %s28
      %s32 = sphi 0, %s31
      %s48 = sphi 0, %s32
      %s52 = sphi 0, %s52
      %s54 = sphi 0, %s52
      %s55 = sphi 0, %s54
      %s69 = sphi 0, %s55
      %s73 = sphi 0, %s73
      %s75 = sphi 0, %s73
      %s76 = sphi 0, %s75
      %s90 = sphi 0, %s76
      %s94 = sphi 0, %s94
      %s96 = sphi 0, %s94
      %s97 = sphi 0, %s96
      %s111 = sphi 0, %s97
      %s115 = sphi 0, %s115
      %s117 = sphi 0, %s115
      %s118 = sphi 0, %s117
      %s132 = sphi 0, %s118
      %s136 = sphi 0, %s136
      %s138 = sphi 0, %s136
      %s139 = sphi 0, %s138
      %s153 = sphi 0, %s139
      %s157 = sphi 0, %s157
      %s159 = sphi 0, %s157
      %s160 = sphi 0, %s159
      %s174 = sphi 0, %s160
      %s180 = sphi 0, %s182
      %s183 = sphi 0, %s180
      %s184 = sphi 0, %s183
      %s200 = sphi 0, %s184
    $region4: #{tpu_custom_call.1} parent=1 // loop_header_branch
      %21 = sbr.rel (%p19) target = $region8
    $region5: #{tpu_custom_call.1} parent=1 // loop_body
      %s23 = ssub.s32 %s18, 1
      %s24 = ssub.s32 %s18, 2
      %s25 = sadd.s32 %s18, 1
      %s26 = ssub.s32 %s18, %s25
      %p27 = scmp.eq.s32.totalorder %s26, 0
      %s29 = sadd.s32 %s28, 1
      %s30 = scalar_select %p27, %s28, %s29
      %p33 = pneg %p27
      %p34 = scmp.eq.s32.totalorder %s18, 1
      %p35 = por %p33, %p34
      %p36 = scmp.ne.s32.totalorder %s28, %s31
      %p37 = scmp.eq.s32.totalorder %s18, 0
      %p38 = por %p36, %p37
      %p39 = scmp.ne.s32.totalorder %s28, %s31
      %p40 = scmp.eq.s32.totalorder %s23, 1
      %p41 = por %p39, %p40
      %p42 = scmp.ne.s32.totalorder %s31, %s32
      %p43 = scmp.eq.s32.totalorder %s23, 0
      %p44 = por %p42, %p43
      %p45 = scmp.ne.s32.totalorder %s31, %s32
      %p46 = scmp.eq.s32.totalorder %s24, 1
      %p47 = por %p45, %p46
      %p49 = scmp.ne.s32.totalorder %s32, %s48
      %p50 = scmp.eq.s32.totalorder %s24, 0
      %p51 = por %p49, %p50
      %s53 = sadd.s32 %s52, 1
      %p56 = scmp.eq.s32.totalorder %s18, 1
      %p57 = scmp.ne.s32.totalorder %s52, %s54
      %p58 = scmp.eq.s32.totalorder %s18, 0
      %p59 = por %p57, %p58
      %p60 = scmp.ne.s32.totalorder %s52, %s54
      %p61 = scmp.eq.s32.totalorder %s23, 1
      %p62 = por %p60, %p61
      %p63 = scmp.ne.s32.totalorder %s54, %s55
      %p64 = scmp.eq.s32.totalorder %s23, 0
      %p65 = por %p63, %p64
      %p66 = scmp.ne.s32.totalorder %s54, %s55
      %p67 = scmp.eq.s32.totalorder %s24, 1
      %p68 = por %p66, %p67
      %p70 = scmp.ne.s32.totalorder %s55, %s69
      %p71 = scmp.eq.s32.totalorder %s24, 0
      %p72 = por %p70, %p71
      %s74 = sadd.s32 %s73, 1
      %p77 = scmp.eq.s32.totalorder %s18, 1
      %p78 = scmp.ne.s32.totalorder %s73, %s75
      %p79 = scmp.eq.s32.totalorder %s18, 0
      %p80 = por %p78, %p79
      %p81 = scmp.ne.s32.totalorder %s73, %s75
      %p82 = scmp.eq.s32.totalorder %s23, 1
      %p83 = por %p81, %p82
      %p84 = scmp.ne.s32.totalorder %s75, %s76
      %p85 = scmp.eq.s32.totalorder %s23, 0
      %p86 = por %p84, %p85
      %p87 = scmp.ne.s32.totalorder %s75, %s76
      %p88 = scmp.eq.s32.totalorder %s24, 1
      %p89 = por %p87, %p88
      %p91 = scmp.ne.s32.totalorder %s76, %s90
      %p92 = scmp.eq.s32.totalorder %s24, 0
      %p93 = por %p91, %p92
      %s95 = sadd.s32 %s94, 1
      %p98 = scmp.eq.s32.totalorder %s18, 1
      %p99 = scmp.ne.s32.totalorder %s94, %s96
      %p100 = scmp.eq.s32.totalorder %s18, 0
      %p101 = por %p99, %p100
      %p102 = scmp.ne.s32.totalorder %s94, %s96
      %p103 = scmp.eq.s32.totalorder %s23, 1
      %p104 = por %p102, %p103
      %p105 = scmp.ne.s32.totalorder %s96, %s97
      %p106 = scmp.eq.s32.totalorder %s23, 0
      %p107 = por %p105, %p106
      %p108 = scmp.ne.s32.totalorder %s96, %s97
      %p109 = scmp.eq.s32.totalorder %s24, 1
      %p110 = por %p108, %p109
      %p112 = scmp.ne.s32.totalorder %s97, %s111
      %p113 = scmp.eq.s32.totalorder %s24, 0
      %p114 = por %p112, %p113
      %s116 = sadd.s32 %s115, 1
      %p119 = scmp.eq.s32.totalorder %s18, 1
      %p120 = scmp.ne.s32.totalorder %s115, %s117
      %p121 = scmp.eq.s32.totalorder %s18, 0
      %p122 = por %p120, %p121
      %p123 = scmp.ne.s32.totalorder %s115, %s117
      %p124 = scmp.eq.s32.totalorder %s23, 1
      %p125 = por %p123, %p124
      %p126 = scmp.ne.s32.totalorder %s117, %s118
      %p127 = scmp.eq.s32.totalorder %s23, 0
      %p128 = por %p126, %p127
      %p129 = scmp.ne.s32.totalorder %s117, %s118
      %p130 = scmp.eq.s32.totalorder %s24, 1
      %p131 = por %p129, %p130
      %p133 = scmp.ne.s32.totalorder %s118, %s132
      %p134 = scmp.eq.s32.totalorder %s24, 0
      %p135 = por %p133, %p134
      %s137 = sadd.s32 %s136, 1
      %p140 = scmp.eq.s32.totalorder %s18, 1
      %p141 = scmp.ne.s32.totalorder %s136, %s138
      %p142 = scmp.eq.s32.totalorder %s18, 0
      %p143 = por %p141, %p142
      %p144 = scmp.ne.s32.totalorder %s136, %s138
      %p145 = scmp.eq.s32.totalorder %s23, 1
      %p146 = por %p144, %p145
      %p147 = scmp.ne.s32.totalorder %s138, %s139
      %p148 = scmp.eq.s32.totalorder %s23, 0
      %p149 = por %p147, %p148
      %p150 = scmp.ne.s32.totalorder %s138, %s139
      %p151 = scmp.eq.s32.totalorder %s24, 1
      %p152 = por %p150, %p151
      %p154 = scmp.ne.s32.totalorder %s139, %s153
      %p155 = scmp.eq.s32.totalorder %s24, 0
      %p156 = por %p154, %p155
      %s158 = sadd.s32 %s157, 1
      %p161 = scmp.eq.s32.totalorder %s18, 1
      %p162 = scmp.ne.s32.totalorder %s157, %s159
      %p163 = scmp.eq.s32.totalorder %s18, 0
      %p164 = por %p162, %p163
      %p165 = scmp.ne.s32.totalorder %s157, %s159
      %p166 = scmp.eq.s32.totalorder %s23, 1
      %p167 = por %p165, %p166
      %p168 = scmp.ne.s32.totalorder %s159, %s160
      %p169 = scmp.eq.s32.totalorder %s23, 0
      %p170 = por %p168, %p169
      %p171 = scmp.ne.s32.totalorder %s159, %s160
      %p172 = scmp.eq.s32.totalorder %s24, 1
      %p173 = por %p171, %p172
      %p175 = scmp.ne.s32.totalorder %s160, %s174
      %p176 = scmp.eq.s32.totalorder %s24, 0
      %p177 = por %p175, %p176
      %s178 = ssub.s32 %s18, %s25
      %p179 = scmp.eq.s32.totalorder %s178, 0
      %s181 = sadd.s32 %s180, 1
      %s182 = scalar_select %p179, %s180, %s181
      %p185 = pneg %p179
      %p186 = scmp.eq.s32.totalorder %s18, 1
      %p187 = por %p185, %p186
      %p188 = scmp.ne.s32.totalorder %s180, %s183
      %p189 = scmp.eq.s32.totalorder %s18, 0
      %p190 = por %p188, %p189
      %p191 = scmp.ne.s32.totalorder %s180, %s183
      %p192 = scmp.eq.s32.totalorder %s23, 1
      %p193 = por %p191, %p192
      %p194 = scmp.ne.s32.totalorder %s183, %s184
      %p195 = scmp.eq.s32.totalorder %s23, 0
      %p196 = por %p194, %p195
      %p197 = scmp.ne.s32.totalorder %s183, %s184
      %p198 = scmp.eq.s32.totalorder %s24, 1
      %p199 = por %p197, %p198
      %p201 = scmp.ne.s32.totalorder %s184, %s200
      %p202 = scmp.eq.s32.totalorder %s24, 0
      %p203 = por %p201, %p202
      %p204 = scmp.le.s32.totalorder 1, %s18
      %p205 = scmp.lt.s32.totalorder %s18, 3
      %p206 = pnand %p204, %p205
      %p207 = pneg %p206
      // Predicated region
      $region9: #{tpu_custom_call.1} parent=5 // pred_check
        _
      $region10: #{tpu_custom_call.1} parent=5 // pred_check_branch
        %209 = sbr.rel (%p206) target = $region12
      $region11: #{tpu_custom_call.1} parent=5 // pred_region
        %s210 = ssub.s32 %s18, 1
        // Predicated region
        $region13: #{tpu_custom_call.1} parent=11 // pred_check
          %p211 = pneg %p65
        $region14: #{tpu_custom_call.1} parent=11 // pred_check_branch
          %213 = sbr.rel (%p211) target = $region16
        $region15: #{tpu_custom_call.1} parent=11 // pred_region
          %s215 = ssub.s32 256, 256
          %216 = vsyncadd [#allocation6], %s215
          %s217 = sshll.u32 [#allocation5], 4
          %s218 = int_to_ptr.vmem [resolvable:$true] %s217
          %223 = dma.hbm_to_vmem [thread:$0]  %s1, 256, %s218, [#allocation6], 64, 64, 4
        $region16: #{tpu_custom_call.1} parent=11 // pred_fallthru
          _
        // Predicated region
        $region17: #{tpu_custom_call.1} parent=11 // pred_check
          %p224 = pneg %p86
        $region18: #{tpu_custom_call.1} parent=11 // pred_check_branch
          %226 = sbr.rel (%p224) target = $region20
        $region19: #{tpu_custom_call.1} parent=11 // pred_region
          _
        $region20: #{tpu_custom_call.1} parent=11 // pred_fallthru
          _
        // Predicated region
        $region21: #{tpu_custom_call.1} parent=11 // pred_check
          %p227 = pneg %p107
        $region22: #{tpu_custom_call.1} parent=11 // pred_check_branch
          %229 = sbr.rel (%p227) target = $region24
        $region23: #{tpu_custom_call.1} parent=11 // pred_region
          %s231 = ssub.s32 1024, 1024
          %232 = vsyncadd [#allocation6], %s231
          %s233 = sshll.u32 [#allocation7], 4
          %s234 = int_to_ptr.vmem [resolvable:$true] %s233
          %239 = dma.hbm_to_vmem [thread:$0]  %s3, 1024, %s234, [#allocation6], 64, 64, 4
        $region24: #{tpu_custom_call.1} parent=11 // pred_fallthru
          _
        // Predicated region
        $region25: #{tpu_custom_call.1} parent=11 // pred_check
          %p240 = pneg %p128
        $region26: #{tpu_custom_call.1} parent=11 // pred_check_branch
          %242 = sbr.rel (%p240) target = $region28
        $region27: #{tpu_custom_call.1} parent=11 // pred_region
          _
        $region28: #{tpu_custom_call.1} parent=11 // pred_fallthru
          _
        // Predicated region
        $region29: #{tpu_custom_call.1} parent=11 // pred_check
          %p243 = pneg %p149
        $region30: #{tpu_custom_call.1} parent=11 // pred_check_branch
          %245 = sbr.rel (%p243) target = $region32
        $region31: #{tpu_custom_call.1} parent=11 // pred_region
          _
        $region32: #{tpu_custom_call.1} parent=11 // pred_fallthru
          _
        // Predicated region
        $region33: #{tpu_custom_call.1} parent=11 // pred_check
          %p246 = pneg %p170
        $region34: #{tpu_custom_call.1} parent=11 // pred_check_branch
          %248 = sbr.rel (%p246) target = $region36
        $region35: #{tpu_custom_call.1} parent=11 // pred_region
          _
        $region36: #{tpu_custom_call.1} parent=11 // pred_fallthru
          _
      $region12: #{tpu_custom_call.1} parent=5 // pred_fallthru
        _
      %p249 = scmp.lt.s32.totalorder %s18, 2
      // Predicated region
      $region37: #{tpu_custom_call.1} parent=5 // pred_check
        %p250 = pneg %p249
      $region38: #{tpu_custom_call.1} parent=5 // pred_check_branch
        %252 = sbr.rel (%p250) target = $region40
      $region39: #{tpu_custom_call.1} parent=5 // pred_region
        // Predicated region
        $region41: #{tpu_custom_call.1} parent=39 // pred_check
          %p253 = pneg %p38
        $region42: #{tpu_custom_call.1} parent=39 // pred_check_branch
          %255 = sbr.rel (%p253) target = $region44
        $region43: #{tpu_custom_call.1} parent=39 // pred_region
          %s256 = sand.u32 %s28, 1
          %s257 = scalar_lea.sflag [#allocation4], %s256
          %s258 = sand.u32 %s28, 1
          %s259 = smul.addr %s258, 8
          %s260 = scalar_lea.vmem [#allocation3], %s259
          %s261 = smul.u32 2, %s18
          %s263 = ssub.s32 128, 128
          %264 = vsyncadd %s257, %s263
          %s265 = smul.addr %s261, 64
          %s266 = scalar_lea.hbm %s0, %s265
          %s267 = sshll.u32 %s260, 4
          %s268 = int_to_ptr.vmem [resolvable:$true] %s267
          %273 = dma.hbm_to_vmem [thread:$0]  %s266, 128, %s268, %s257, 64, 64, 4
        $region44: #{tpu_custom_call.1} parent=39 // pred_fallthru
          _
      $region40: #{tpu_custom_call.1} parent=5 // pred_fallthru
        _
      %p274 = scmp.le.s32.totalorder 1, %s18
      %p275 = scmp.lt.s32.totalorder %s18, 3
      %p276 = pnand %p274, %p275
      %p277 = pneg %p276
      // Predicated region
      $region45: #{tpu_custom_call.1} parent=5 // pred_check
        _
      $region46: #{tpu_custom_call.1} parent=5 // pred_check_branch
        %279 = sbr.rel (%p276) target = $region48
      $region47: #{tpu_custom_call.1} parent=5 // pred_region
        %s280 = ssub.s32 %s18, 1
        %s281 = sand.u32 %s31, 1
        %s282 = scalar_lea.sflag [#allocation4], %s281
        %s283 = sand.u32 %s31, 1
        %s284 = smul.addr %s283, 8
        %s285 = scalar_lea.vmem [#allocation3], %s284
        // Predicated region
        $region49: #{tpu_custom_call.1} parent=47 // pred_check
          %p286 = pneg %p44
        $region50: #{tpu_custom_call.1} parent=47 // pred_check_branch
          %288 = sbr.rel (%p286) target = $region52
        $region51: #{tpu_custom_call.1} parent=47 // pred_region
          %289 = dma.done %s282, 128
        $region52: #{tpu_custom_call.1} parent=47 // pred_fallthru
          _
        // Predicated region
        $region53: #{tpu_custom_call.1} parent=47 // pred_check
          %p290 = pneg %p65
        $region54: #{tpu_custom_call.1} parent=47 // pred_check_branch
          %292 = sbr.rel (%p290) target = $region56
        $region55: #{tpu_custom_call.1} parent=47 // pred_region
          %293 = dma.done [#allocation6], 256
        $region56: #{tpu_custom_call.1} parent=47 // pred_fallthru
          _
        // Predicated region
        $region57: #{tpu_custom_call.1} parent=47 // pred_check
          %p294 = pneg %p107
        $region58: #{tpu_custom_call.1} parent=47 // pred_check_branch
          %296 = sbr.rel (%p294) target = $region60
        $region59: #{tpu_custom_call.1} parent=47 // pred_region
          %297 = dma.done [#allocation6], 1024
        $region60: #{tpu_custom_call.1} parent=47 // pred_fallthru
          _
        %s298 = sand.u32 %s31, 1
        %s299 = scalar_lea.sflag [#allocation4], %s298
        %s300 = sand.u32 %s31, 1
        %s301 = smul.addr %s300, 8
        %s302 = scalar_lea.vmem [#allocation3], %s301
        %p303 = pneg %p44
        %p304 = pneg %p41
        %p305 = pneg %p65
        %p306 = pneg %p62
        %p307 = pneg %p86
        %p308 = pneg %p83
        %p309 = pneg %p107
        %p310 = pneg %p104
        %p311 = pneg %p128
        %p312 = pneg %p125
        %p313 = pneg %p149
        %p314 = pneg %p146
        %p315 = pneg %p170
        %p316 = pneg %p167
        %p317 = pneg %p196
        %p318 = pneg %p193
        %s319 = smul.u32 2, %s23
        %p320 = scmp.lt.s32.totalorder %s319, 3
        %s321 = scalar_select %p320, %s319, 3
        %s322 = smul.addr %s321, 8
        %s323 = scalar_lea.vmem %s7, %s322
        %s324 = smul.u32 2, %s23
        %s325 = smul.u32 2, %s23
        %p326 = scmp.lt.s32.totalorder %s325, 3
        %s327 = scalar_select %p326, %s325, 3
        %s328 = smul.addr %s327, 8
        %s329 = scalar_lea.vmem %s7, %s328
        %s330 = smul.u32 2, %s23
        %v332 = vld [vmem:[%s2] sm:$0x1]
        %v333 = vld [vmem:[%s4] sm:$0x1]
        %v334 = vld [vmem:[%s5] sm:$0x1]
        %s335 = sld [smem:[#allocation2]]
        %v336 = vld [vmem:[%s285] sm:$0xf]
        %v337 = vld [vmem:[%s285 + $0x4] sm:$0xf]
        %v338 = vld [vmem:[#allocation5] sm:$0xf]
        %v339 = vld [vmem:[#allocation5 + $0x4] sm:$0xf]
        %v340 = vld [vmem:[#allocation5 + $0x8] sm:$0xf]
        %v341 = vld [vmem:[#allocation5 + $0xc] sm:$0xf]
        %v343 = vlaneseq
        %v344 = vshrl.u32 %v343, 7
        %v345 = vsub.s32 0, %v344
        %v346 = vrot.slane %v332, %v345
        %v350 = vunpack.c.l.b16 %v336
        %v351 = vunpack.c.l.b16 %v337
        %v352 = vpack.c.b16 %v351, %v350
        %v357 = vunpack.c.l.b16 %v338
        %v358 = vunpack.c.l.b16 %v339
        %v359 = vunpack.c.l.b16 %v340
        %v360 = vunpack.c.l.b16 %v341
        %v361 = vpack.c.b16 %v358, %v357
        %v362 = vpack.c.b16 %v360, %v359
        %vm365 = vcmask 261120
        %v367 = vsel %vm365, %v352, 0
        %369 = vmatprep.subr.bf16.mxu0 0
        %370 = vmatpush1.bf16.msra.mxu0 %v361
        %371 = vmatprep.subr.bf16.mxu0 0
        %372 = vmatpush1.bf16.msra.mxu0 %v362
        %373 = vmatprep.subr.bf16.mxu0 0
        %374 = vmatpush1.bf16.msra.mxu0 0
        %375 = vmatprep.subr.bf16.mxu0 0
        %376 = vmatpush1.bf16.msra.mxu0 0
        %377 = vmatprep.subr.bf16.mxu0 0
        %378 = vmatpush1.bf16.msra.mxu0 0
        %379 = vmatprep.subr.bf16.mxu0 0
        %380 = vmatpush1.bf16.msra.mxu0 0
        %381 = vmatprep.subr.bf16.mxu0 0
        %382 = vmatpush1.bf16.msra.mxu0 0
        %383 = vmatprep.subr.bf16.mxu0 0
        %384 = vmatpush1.bf16.msra.mxu0 0
        %385 = vmatprep.subr.bf16.mxu0 0
        %386 = vmatpush1.bf16.msra.mxu0 0
        %387 = vmatprep.subr.bf16.mxu0 0
        %388 = vmatpush1.bf16.msra.mxu0 0
        %389 = vmatprep.subr.bf16.mxu0 0
        %390 = vmatpush1.bf16.msra.mxu0 0
        %391 = vmatprep.subr.bf16.mxu0 0
        %392 = vmatpush1.bf16.msra.mxu0 0
        %393 = vmatprep.subr.bf16.mxu0 0
        %394 = vmatpush1.bf16.msra.mxu0 0
        %395 = vmatprep.subr.bf16.mxu0 0
        %396 = vmatpush1.bf16.msra.mxu0 0
        %397 = vmatprep.subr.bf16.mxu0 0
        %398 = vmatpush1.bf16.msra.mxu0 0
        %399 = vmatprep.subr.bf16.mxu0 0
        %400 = vmatpush1.bf16.msra.mxu0 0
        %401 = vmatprep.mubr.bf16.mxu0 0
        %402 = vmatmul.mubr.bf16.gmra.mrb[0].mxu0 %v367
        %v403 = vpop.f32.mrb[0].mxu0
        %v404 = vadd.f32 %v346, %v403
        %v405 = vpop.f32.mrb[0].mxu0
        %v406 = vpop.f32.mrb[0].mxu0
        %v407 = vadd.f32 %v346, %v406
        %v408 = vpop.f32.mrb[0].mxu0
        %409 = vdwg.mxu0
        %v410 = vmax.f32 %v404, 0.0
        %v411 = vmax.f32 %v407, 0.0
        %v412 = vpack.c.bf16 %v411, %v410
        %v413 = vld [vmem:[#allocation7] sm:$0xf]
        %v414 = vld [vmem:[#allocation7 + $0x4] sm:$0xf]
        %v415 = vld [vmem:[#allocation7 + $0x8] sm:$0xf]
        %v416 = vld [vmem:[#allocation7 + $0xc] sm:$0xf]
        %v417 = vld [vmem:[#allocation7 + $0x10] sm:$0xf]
        %v418 = vld [vmem:[#allocation7 + $0x14] sm:$0xf]
        %v419 = vld [vmem:[#allocation7 + $0x18] sm:$0xf]
        %v420 = vld [vmem:[#allocation7 + $0x1c] sm:$0xf]
        %v421 = vld [vmem:[#allocation7 + $0x20] sm:$0xf]
        %v422 = vld [vmem:[#allocation7 + $0x24] sm:$0xf]
        %v423 = vld [vmem:[#allocation7 + $0x28] sm:$0xf]
        %v424 = vld [vmem:[#allocation7 + $0x2c] sm:$0xf]
        %v425 = vld [vmem:[#allocation7 + $0x30] sm:$0xf]
        %v426 = vld [vmem:[#allocation7 + $0x34] sm:$0xf]
        %v427 = vld [vmem:[#allocation7 + $0x38] sm:$0xf]
        %v428 = vld [vmem:[#allocation7 + $0x3c] sm:$0xf]
        %v430 = vlaneseq
        %v431 = vshrl.u32 %v430, 7
        %v432 = vsub.s32 0, %v431
        %v433 = vrot.slane %v333, %v432
        %v451 = vunpack.c.l.b16 %v413
        %v452 = vunpack.c.l.b16 %v414
        %v453 = vunpack.c.l.b16 %v415
        %v454 = vunpack.c.l.b16 %v416
        %v455 = vunpack.c.l.b16 %v417
        %v456 = vunpack.c.l.b16 %v418
        %v457 = vunpack.c.l.b16 %v419
        %v458 = vunpack.c.l.b16 %v420
        %v459 = vunpack.c.l.b16 %v421
        %v460 = vunpack.c.l.b16 %v422
        %v461 = vunpack.c.l.b16 %v423
        %v462 = vunpack.c.l.b16 %v424
        %v463 = vunpack.c.l.b16 %v425
        %v464 = vunpack.c.l.b16 %v426
        %v465 = vunpack.c.l.b16 %v427
        %v466 = vunpack.c.l.b16 %v428
        %v467 = vpack.c.b16 %v452, %v451
        %v468 = vpack.c.b16 %v454, %v453
        %v469 = vpack.c.b16 %v456, %v455
        %v470 = vpack.c.b16 %v458, %v457
        %v471 = vpack.c.b16 %v460, %v459
        %v472 = vpack.c.b16 %v462, %v461
        %v473 = vpack.c.b16 %v464, %v463
        %v474 = vpack.c.b16 %v466, %v465
        %483 = vmatprep.subr.bf16.mxu0 0
        %484 = vmatpush1.bf16.msra.mxu0 %v467
        %485 = vmatprep.subr.bf16.mxu0 0
        %486 = vmatpush1.bf16.msra.mxu0 %v468
        %487 = vmatprep.subr.bf16.mxu0 0
        %488 = vmatpush1.bf16.msra.mxu0 %v469
        %489 = vmatprep.subr.bf16.mxu0 0
        %490 = vmatpush1.bf16.msra.mxu0 %v470
        %491 = vmatprep.subr.bf16.mxu0 0
        %492 = vmatpush1.bf16.msra.mxu0 %v471
        %493 = vmatprep.subr.bf16.mxu0 0
        %494 = vmatpush1.bf16.msra.mxu0 %v472
        %495 = vmatprep.subr.bf16.mxu0 0
        %496 = vmatpush1.bf16.msra.mxu0 %v473
        %497 = vmatprep.subr.bf16.mxu0 0
        %498 = vmatpush1.bf16.msra.mxu0 %v474
        %499 = vmatprep.subr.bf16.mxu0 0
        %500 = vmatpush1.bf16.msra.mxu0 0
        %501 = vmatprep.subr.bf16.mxu0 0
        %502 = vmatpush1.bf16.msra.mxu0 0
        %503 = vmatprep.subr.bf16.mxu0 0
        %504 = vmatpush1.bf16.msra.mxu0 0
        %505 = vmatprep.subr.bf16.mxu0 0
        %506 = vmatpush1.bf16.msra.mxu0 0
        %507 = vmatprep.subr.bf16.mxu0 0
        %508 = vmatpush1.bf16.msra.mxu0 0
        %509 = vmatprep.subr.bf16.mxu0 0
        %510 = vmatpush1.bf16.msra.mxu0 0
        %511 = vmatprep.subr.bf16.mxu0 0
        %512 = vmatpush1.bf16.msra.mxu0 0
        %513 = vmatprep.subr.bf16.mxu0 0
        %514 = vmatpush1.bf16.msra.mxu0 0
        %515 = vmatprep.mubr.bf16.mxu0 0
        %516 = vmatmul.mubr.bf16.gmra.mrb[0].mxu0 %v412
        %v517 = vpop.f32.mrb[0].mxu0
        %v518 = vadd.f32 %v433, %v517
        %v519 = vpop.f32.mrb[0].mxu0
        %v520 = vpop.f32.mrb[0].mxu0
        %v521 = vadd.f32 %v433, %v520
        %v522 = vpop.f32.mrb[0].mxu0
        %523 = vdwg.mxu0
        %v524 = vmax.f32 %v518, 0.0
        %v525 = vmax.f32 %v521, 0.0
        %v527 = vlaneseq
        %v528 = vshrl.u32 %v527, 7
        %v529 = vsub.s32 0, %v528
        %v530 = vrot.slane %v334, %v529
        %v532 = vmul.f32 %v524, %v530
        %v533 = vmul.f32 %v525, %v530
        %534 = vadd.xlane.f32.xlu0 %v532
        %v535 = vpop.xlane.xlu0 %534
        %536 = vadd.xlane.f32.xlu0 %v533
        %v537 = vpop.xlane.xlu0 %536
        %v538 = vstv %s335
        %v539 = vadd.f32 %v535, %v538
        %v540 = vadd.f32 %v537, %v538
        %vm541 = vcmask 7168
        %542 = vst.msk [vmem:[%s329] sm:$0xff] %vm541, %v539
        %543 = vst.msk [vmem:[%s329 + $0x8] sm:$0xff] %vm541, %v540
        %s544 = smul.u32 2, %s23
        %p545 = scmp.lt.s32.totalorder %s544, 3
        %s546 = scalar_select %p545, %s544, 3
        %s547 = smul.addr %s546, 8
        %s548 = scalar_lea.vmem %s7, %s547
        // Predicated region
        $region61: #{tpu_custom_call.1} parent=47 // pred_check
          %p549 = pneg %p193
        $region62: #{tpu_custom_call.1} parent=47 // pred_check_branch
          %551 = sbr.rel (%p549) target = $region64
        $region63: #{tpu_custom_call.1} parent=47 // pred_region
          %s552 = smul.u32 2, %s23
        $region64: #{tpu_custom_call.1} parent=47 // pred_fallthru
          _
      $region48: #{tpu_custom_call.1} parent=5 // pred_fallthru
        _
      %p553 = scmp.le.s32.totalorder 2, %s18
      // Predicated region
      $region65: #{tpu_custom_call.1} parent=5 // pred_check
        %p554 = pneg %p553
      $region66: #{tpu_custom_call.1} parent=5 // pred_check_branch
        %556 = sbr.rel (%p554) target = $region68
      $region67: #{tpu_custom_call.1} parent=5 // pred_region
        %s557 = ssub.s32 %s18, 2
        // Predicated region
        $region69: #{tpu_custom_call.1} parent=67 // pred_check
          %p558 = pneg %p199
        $region70: #{tpu_custom_call.1} parent=67 // pred_check_branch
          %560 = sbr.rel (%p558) target = $region72
        $region71: #{tpu_custom_call.1} parent=67 // pred_region
          %s561 = smul.u32 2, %s24
          %p562 = scmp.lt.s32.totalorder %s561, 3
          %s563 = scalar_select %p562, %s561, 3
          %s564 = smul.addr %s563, 8
          %s565 = scalar_lea.vmem %s7, %s564
        $region72: #{tpu_custom_call.1} parent=67 // pred_fallthru
          _
      $region68: #{tpu_custom_call.1} parent=5 // pred_fallthru
        _
    $region6: #{tpu_custom_call.1} parent=1 // loop_footer
      %s22 = sadd.s32 1, %s18
    $region7: #{tpu_custom_call.1} parent=1 // loop_footer_branch
      %17 = sbr.rel target = $region3
    $region8: #{tpu_custom_call.1} parent=1 // loop_exit
      _
    %566 = vsyncpa [#allocation4], 1
    %s567 = scalar_lea.sflag [#allocation4], 1
    %568 = vsyncpa %s567, 1
    %569 = vsyncpa [#allocation6], 1

</llo_original>
